<compile_context>
chip_gen: v7x
topology: tpu7x:2x2x1
jax: 0.10.0
libtpu: 0.0.40
codegen_flags: <defaults>
</compile_context>

<pallas_src>
import functools
import math

import jax
import jax.numpy as jnp
from jax.experimental import pallas as pl
from jax.experimental.pallas import tpu as pltpu


def _round_up(x, m):
    return ((x + m - 1) // m) * m


def _cce_tile_kernel(pred_ref, true_ref, out_ref, *, from_logits, valid_rows,
                     r_tile, g_tile):
    """One (group-tile, row-tile) step.

    pred_ref / true_ref : (g_tile, r_tile, C) input blocks.
    out_ref             : (1, 1, g_tile, 128) lane-dense slab; per-group
                          partial loss sums splat across lanes (wrapper reads
                          [..., 0]).
    """
    s = pl.program_id(1)

    p = pred_ref[...].astype(jnp.float32)                  # (G, R, C)
    t = true_ref[...].astype(jnp.float32)

    sum_tp = jnp.sum(t * p, axis=-1, keepdims=True)        # (G, R, 1)
    if from_logits:
        # -(t * log_softmax(p)).sum(-1) == (m + lse)*sum(t) - sum(t*p);
        # sum(t)/sum(t*p) come from the raw inputs and (p - m) only feeds exp,
        # so no full-tile z / t*z temporaries stay live.
        sum_t = jnp.sum(t, axis=-1, keepdims=True)          # (G, R, 1)
        m = jnp.max(p, axis=-1, keepdims=True)               # (G, R, 1)
        lse = jnp.log(jnp.sum(jnp.exp(p - m), axis=-1, keepdims=True))
        row_loss = (m + lse) * sum_t - sum_tp                # (G, R, 1)
    else:
        # Spec uses pred directly as log-probabilities when from_logits=False.
        row_loss = -sum_tp                                   # (G, R, 1)

    # Mask rows past the logical row count: the last row tile may overhang and
    # its out-of-bounds rows hold garbage that must contribute exactly zero.
    r_idx = jax.lax.broadcasted_iota(jnp.int32, row_loss.shape, 1)
    row_loss = jnp.where(s * r_tile + r_idx < valid_rows, row_loss, 0.0)

    grp = jnp.sum(row_loss, axis=1)                          # (G, 1)
    out_ref[...] = jnp.broadcast_to(grp.reshape(1, 1, g_tile, 1),
                                    out_ref.shape)


def _tpu_vmem_capacity():
    try:
        return int(pltpu.get_tpu_info().vmem_capacity_bytes)
    except Exception:
        return 64 * 1024 * 1024          # conservative default (v7x per-TC)


_GROUP_BATCH_TARGET = 512 * 1024         # aim ~0.5 MiB of input per grid step
_MIN_GRID_STEPS = 4                      # keep pipeline / both v7x TCs busy
_MAX_TILE_ROWS = 4096


def _pick_group_tile(groups, rows, c_pad, itemsize):
    """Batch whole (small) groups per grid step.  g_tile always divides
    `groups`, so no group-overhang masking is ever needed."""
    if groups == 1:
        return 1
    group_bytes = 2 * rows * c_pad * itemsize     # both inputs, one group
    if group_bytes >= _GROUP_BATCH_TARGET:
        return 1
    want = int(min(groups, 256,
                   max(1, _GROUP_BATCH_TARGET // max(group_bytes, 1))))
    for g in range(want, 0, -1):
        if groups % g == 0:
            return g
    return 1


def _pick_row_tile(rows, c_pad, itemsize, g_tile, n_g, vmem_cap):
    """Largest balanced row tile keeping 2 inputs x 2 pipeline buffers plus
    ~4 f32 full-tile temporaries inside ~1/4 of this generation's VMEM, then
    evened out so the grid has >= _MIN_GRID_STEPS near-equal steps."""
    # NOTE: temporary accounting matches _vmem_limit (4 f32 temps / element).
    bytes_per_row = g_tile * (2 * 2 * c_pad * itemsize + 4 * c_pad * 4)
    budget = vmem_cap // 4
    tr_max = max(1, budget // bytes_per_row)
    # sublane granule: 8 rows for 4-byte dtypes, 16 for bf16, 32 for 8-bit.
    gran = max(8, 32 // itemsize)
    tr_max = min(_MAX_TILE_ROWS, max(gran, (tr_max // gran) * gran))
    # Balanced steps: enough total grid steps that the BlockSpec pipeline (and
    # v7x's second TensorCore) always has overlapping work, with equal tiles.
    min_row_steps = pl.cdiv(_MIN_GRID_STEPS, max(n_g, 1))
    n = max(pl.cdiv(rows, tr_max), min_row_steps, 1)
    tr = _round_up(pl.cdiv(rows, n), gran)
    tr = min(tr, _round_up(rows, gran))
    tr = max(tr, gran)
    # TODO(synk): for vocab-scale C (gran*c_pad*(4 bufs + temps) > budget) add
    # a class-axis grid dimension with a streaming/two-pass logsumexp instead
    # of clamping the row tile to a single granule.
    return int(tr)


def _vmem_limit(g_tile, r_tile, c_pad, itemsize, vmem_cap):
    tile_elems = g_tile * r_tile * c_pad
    need = 2 * 2 * tile_elems * itemsize    # double-buffered input blocks
    need += 4 * tile_elems * 4              # in-kernel f32 temporaries
    need += 2 * g_tile * 128 * 4            # double-buffered output slabs
    need += 2 << 20                         # compiler scratch slack
    # Cap at half of physical VMEM: leaves headroom on v7x's 64 MiB per TC.
    return int(min(max(need, 16 << 20), vmem_cap // 2))


def categorical_cross_entropy(pred, true, *, from_logits, reduction="mean"):
    assert pred.shape == true.shape
    lead, C = pred.shape[:-1], pred.shape[-1]
    R = math.prod(lead)                      # total number of rows

    if reduction == "mean" or len(lead) <= 1:
        groups, rows = 1, R                  # single reduction group
    elif reduction == "sum":
        groups, rows = math.prod(lead[:-1]), lead[-1]
    else:
        raise AssertionError()

    # from_logits=False is linear in the elements: re-view each group as
    # (L/128, 128) lane-dense pseudo-rows whenever possible so small C never
    # costs 4x lane padding.
    if (not from_logits) and (rows * C) % 128 == 0:
        rows_k, c_k = (rows * C) // 128, 128
    else:
        rows_k, c_k = rows, C

    pred3 = pred.reshape(groups, rows_k, c_k)
    true3 = true.reshape(groups, rows_k, c_k)

    itemsize = jnp.dtype(pred.dtype).itemsize
    c_pad = _round_up(c_k, 128)
    vmem_cap = _tpu_vmem_capacity()

    g_tile = _pick_group_tile(groups, rows_k, c_pad, itemsize)
    n_g = groups // g_tile
    r_tile = _pick_row_tile(rows_k, c_pad, itemsize, g_tile, n_g, vmem_cap)
    n_r = pl.cdiv(rows_k, r_tile)

    kern = functools.partial(_cce_tile_kernel, from_logits=from_logits,
                             valid_rows=rows_k, r_tile=r_tile, g_tile=g_tile)
    # TODO(synk): for very small per-step tiles (<~256 KiB) pipeline_mode=
    # pl.Buffered(3) on the two input BlockSpecs is the remaining DMA knob.
    partials = pl.pallas_call(
        kern,
        out_shape=jax.ShapeDtypeStruct((n_g, n_r, g_tile, 128), jnp.float32),
        grid_spec=pltpu.PrefetchScalarGridSpec(
            num_scalar_prefetch=0,
            grid=(n_g, n_r),
            in_specs=[pl.BlockSpec((g_tile, r_tile, c_k),
                                   lambda g, s: (g, s, 0)),
                      pl.BlockSpec((g_tile, r_tile, c_k),
                                   lambda g, s: (g, s, 0))],
            out_specs=pl.BlockSpec((1, 1, g_tile, 128),
                                   lambda g, s: (g, s, 0, 0))),
        compiler_params=pltpu.CompilerParams(
            dimension_semantics=("parallel", "parallel"),
            vmem_limit_bytes=_vmem_limit(g_tile, r_tile, c_pad, itemsize,
                                         vmem_cap)),
    )(pred3, true3)

    # Tiny (n_g, n_r, g_tile) partial reduction finishes in XLA.
    per_group = partials[:, :, :, 0].sum(axis=1).reshape(groups)
    out_dtype = jnp.promote_types(pred.dtype, true.dtype)

    if reduction == "mean":
        return (per_group[0] / jnp.float32(R)).astype(out_dtype)
    if len(lead) <= 1:
        return per_group[0].astype(out_dtype)
    return per_group.reshape(lead[:-1]).astype(out_dtype)


def _reference(pred, true, *, from_logits, reduction):
    p = pred.astype(jnp.float32)
    t = true.astype(jnp.float32)
    if from_logits:
        p = jax.nn.log_softmax(p, axis=-1)
    loss = -(t * p).sum(-1)
    if reduction == "mean":
        return loss.mean()
    return loss.sum(-1)


if __name__ == "__main__":
    key = jax.random.PRNGKey(0)
    k1, k2, k3, k4 = jax.random.split(key, 4)

    # batch=2, seq=8, classes=32
    B, S, C = 2, 8, 32
    logits = jax.random.normal(k1, (B, S, C), dtype=jnp.float32)
    true = jax.nn.softmax(jax.random.normal(k2, (B, S, C), dtype=jnp.float32),
                          axis=-1)

    # reduction='mean', from_logits=True
    out = jax.block_until_ready(categorical_cross_entropy(
        logits, true, from_logits=True, reduction="mean"))
    ref = _reference(logits, true, from_logits=True, reduction="mean")
    assert jnp.allclose(out, ref, atol=1e-5, rtol=1e-5), (out, ref)

    # reduction='sum', from_logits=True  (loss.sum(-1) -> shape (B,));
    # exercises the group-batched path (g_tile = B per step).
    out = jax.block_until_ready(categorical_cross_entropy(
        logits, true, from_logits=True, reduction="sum"))
    ref = _reference(logits, true, from_logits=True, reduction="sum")
    assert jnp.allclose(out, ref, atol=1e-5, rtol=1e-5), (out, ref)

    # from_logits=False (pred already log-probs), 2-D input, sum -> scalar;
    # exercises the flat lane-dense linear path (rows*C multiple of 128).
    logp2 = jax.nn.log_softmax(
        jax.random.normal(k3, (S, C), dtype=jnp.float32), axis=-1)
    true2 = jax.nn.softmax(
        jax.random.normal(k4, (S, C), dtype=jnp.float32), axis=-1)
    out = jax.block_until_ready(categorical_cross_entropy(
        logp2, true2, from_logits=False, reduction="sum"))
    ref = _reference(logp2, true2, from_logits=False, reduction="sum")
    assert jnp.allclose(out, ref, atol=1e-5, rtol=1e-5), (out, ref)

    # non-multiple-of-8 rows exercise the in-kernel tail masking (no padding)
    B3, S3 = 3, 5
    lg3 = jax.random.normal(k1, (B3, S3, C), dtype=jnp.float32)
    tr3 = jax.nn.softmax(jax.random.normal(k2, (B3, S3, C), dtype=jnp.float32),
                         axis=-1)
    for fl in (True, False):
        for red in ("mean", "sum"):
            out = jax.block_until_ready(categorical_cross_entropy(
                lg3, tr3, from_logits=fl, reduction=red))
            ref = _reference(lg3, tr3, from_logits=fl, reduction=red)
            assert jnp.allclose(out, ref, atol=1e-5, rtol=1e-5), (fl, red, out,
                                                                  ref)

    # slightly larger case exercising multiple balanced row tiles
    B4, S4 = 4, 128
    lg4 = jax.random.normal(k3, (B4, S4, C), dtype=jnp.float32)
    tr4 = jax.nn.softmax(jax.random.normal(k4, (B4, S4, C), dtype=jnp.float32),
                         axis=-1)
    out = jax.block_until_ready(categorical_cross_entropy(
        lg4, tr4, from_logits=True, reduction="mean"))
    ref = _reference(lg4, tr4, from_logits=True, reduction="mean")
    assert jnp.allclose(out, ref, atol=1e-4, rtol=1e-5), (out, ref)

    print("KERNEL_OK")
</pallas_src>

<mosaic_0001>
module attributes {stable_mosaic.version = 11 : i64} {
  func.func @_cce_tile_kernel(%arg0: i32, %arg1: i32, %arg2: memref<1x8x32xf32, #tpu.memory_space<vmem>>, %arg3: memref<1x8x32xf32, #tpu.memory_space<vmem>>, %arg4: memref<1x1x1x128xf32, #tpu.memory_space<vmem>>) attributes {dimension_semantics = [#tpu.dimension_semantics<parallel>, #tpu.dimension_semantics<parallel>], iteration_bounds = array<i64: 1, 2>, scalar_prefetch = 0 : i64, scratch_operands = 0 : i64, tpu.core_type = #tpu.core_type<tc>, window_params = [{transform_indices = @transform_0, window_bounds = array<i64: 1, 8, 32>}, {transform_indices = @transform_1, window_bounds = array<i64: 1, 8, 32>}, {transform_indices = @transform_2, window_bounds = array<i64: 1, 1, 1, 128>}]} {
    %c0 = arith.constant 0 : index
    %c0_0 = arith.constant 0 : index
    %c0_1 = arith.constant 0 : index
    %0 = vector.load %arg2[%c0, %c0_0, %c0_1] : memref<1x8x32xf32, #tpu.memory_space<vmem>>, vector<1x8x32xf32>
    %c0_2 = arith.constant 0 : index
    %c0_3 = arith.constant 0 : index
    %c0_4 = arith.constant 0 : index
    %1 = vector.load %arg3[%c0_2, %c0_3, %c0_4] : memref<1x8x32xf32, #tpu.memory_space<vmem>>, vector<1x8x32xf32>
    %2 = arith.mulf %1, %0 : vector<1x8x32xf32>
    %cst = arith.constant dense<0.000000e+00> : vector<1x8xf32>
    %3 = vector.multi_reduction <add>, %2, %cst [2] : vector<1x8x32xf32> to vector<1x8xf32>
    %4 = vector.shape_cast %3 : vector<1x8xf32> to vector<1x8x1xf32>
    %cst_5 = arith.constant dense<0.000000e+00> : vector<1x8xf32>
    %5 = vector.multi_reduction <add>, %1, %cst_5 [2] : vector<1x8x32xf32> to vector<1x8xf32>
    %6 = vector.shape_cast %5 : vector<1x8xf32> to vector<1x8x1xf32>
    %cst_6 = arith.constant dense<0xFF800000> : vector<1x8xf32>
    %7 = vector.multi_reduction <maximumf>, %0, %cst_6 [2] : vector<1x8x32xf32> to vector<1x8xf32>
    %8 = vector.shape_cast %7 : vector<1x8xf32> to vector<1x8x1xf32>
    %9 = vector.broadcast %8 : vector<1x8x1xf32> to vector<1x8x32xf32>
    %10 = arith.subf %0, %9 : vector<1x8x32xf32>
    %11 = math.exp %10 : vector<1x8x32xf32>
    %cst_7 = arith.constant dense<0.000000e+00> : vector<1x8xf32>
    %12 = vector.multi_reduction <add>, %11, %cst_7 [2] : vector<1x8x32xf32> to vector<1x8xf32>
    %13 = vector.shape_cast %12 : vector<1x8xf32> to vector<1x8x1xf32>
    %14 = math.log %13 : vector<1x8x1xf32>
    %15 = arith.addf %8, %14 : vector<1x8x1xf32>
    %16 = arith.mulf %15, %6 : vector<1x8x1xf32>
    %17 = arith.subf %16, %4 : vector<1x8x1xf32>
    %18 = tpu.iota {dimensions = array<i32: 1>} : vector<1x8x1xi32>
    %c8_i32 = arith.constant 8 : i32
    %19 = arith.muli %arg1, %c8_i32 : i32
    %20 = vector.broadcast %19 : i32 to vector<1x8x1xi32>
    %21 = arith.addi %20, %18 : vector<1x8x1xi32>
    %c16_i32 = arith.constant 16 : i32
    %22 = vector.broadcast %c16_i32 : i32 to vector<1x8x1xi32>
    %23 = arith.cmpi slt, %21, %22 : vector<1x8x1xi32>
    %cst_8 = arith.constant 0.000000e+00 : f32
    %24 = vector.broadcast %cst_8 : f32 to vector<1x8x1xf32>
    %25 = arith.select %23, %17, %24 : vector<1x8x1xi1>, vector<1x8x1xf32>
    %cst_9 = arith.constant dense<0.000000e+00> : vector<1x1xf32>
    %26 = vector.multi_reduction <add>, %25, %cst_9 [1] : vector<1x8x1xf32> to vector<1x1xf32>
    %27 = vector.shape_cast %26 : vector<1x1xf32> to vector<1x1x1x1xf32>
    %28 = vector.shape_cast %27 : vector<1x1x1x1xf32> to vector<1x1x1x1xf32>
    %29 = vector.broadcast %28 : vector<1x1x1x1xf32> to vector<1x1x1x128xf32>
    %c0_10 = arith.constant 0 : index
    %c0_11 = arith.constant 0 : index
    %c0_12 = arith.constant 0 : index
    %c0_13 = arith.constant 0 : index
    %30 = vector.load %arg4[%c0_10, %c0_11, %c0_12, %c0_13] : memref<1x1x1x128xf32, #tpu.memory_space<vmem>>, vector<1x1x1x128xf32>
    tpu.vector_store %arg4[%c0_10, %c0_11, %c0_12, %c0_13], %29 {strides = array<i32>} : memref<1x1x1x128xf32, #tpu.memory_space<vmem>>, vector<1x1x1x128xf32>,
    return
  }
  func.func @transform_0(%arg0: i32, %arg1: i32) -> (i32, i32, i32) {
    %c0_i32 = arith.constant 0 : i32
    %c0_i32_0 = arith.constant 0 : i32
    return %arg0, %arg1, %c0_i32 : i32, i32, i32
  }
  func.func @transform_1(%arg0: i32, %arg1: i32) -> (i32, i32, i32) {
    %c0_i32 = arith.constant 0 : i32
    %c0_i32_0 = arith.constant 0 : i32
    return %arg0, %arg1, %c0_i32 : i32, i32, i32
  }
  func.func @transform_2(%arg0: i32, %arg1: i32) -> (i32, i32, i32, i32) {
    %c0_i32 = arith.constant 0 : i32
    %c0_i32_0 = arith.constant 0 : i32
    %c0_i32_1 = arith.constant 0 : i32
    return %arg0, %arg1, %c0_i32, %c0_i32_0 : i32, i32, i32, i32
  }
}

</mosaic_0001>

<llo_original>
// kernel: tpu_custom_call.1
$region0: #{tpu_custom_call.1}
  #allocation0 [shape = 'u32[]', space=smem, size = 0x4, offset = 0x4, fixed_abs, tag = 'smem constant byte address 0x4 - core index']
  #allocation1 [shape = 'u32[144,128]{1,0:T(1,128)}', space=vmem, size = 0x12000, scoped, tag = 'internal scratch']
  %s0 = inlined_call_operand.hbm [shape: f32[1,16,32], index: 0, kind: input, shape index: {}]
  %s1 = inlined_call_operand.hbm [shape: f32[1,16,32], index: 1, kind: input, shape index: {}]
  %s2 = inlined_call_operand.hbm [shape: f32[1,2,1,128], index: 2, kind: output, shape index: {}]
  %s3 = sld [smem:[#allocation0]]
  $region49: #{tpu_custom_call.1} parent=0
    _
  %s5 = ssub.s32 1, %s3
  %s6 = scalar_select 0, %s5, %s3
  $region1: #{tpu_custom_call.1} parent=0
    #allocation2 [shape = 'u8[8192]{0}', space=vmem, size = 0x2000, scoped, tag = 'input window, operand 0']
    #allocation3 [shape = 's32[2]{0}', space=sflag, size = 0x8, scoped, tag = 'scoped memory for tpu_custom_call.1']
    #allocation4 [shape = 's32[2]{0}', space=sflag, size = 0x8, scoped, tag = 'scoped memory for tpu_custom_call.1']
    #allocation5 [shape = 'u8[8192]{0}', space=vmem, size = 0x2000, scoped, tag = 'input window, operand 1']
    #allocation6 [shape = 's32[2]{0}', space=sflag, size = 0x8, scoped, tag = 'scoped memory for tpu_custom_call.1']
    #allocation7 [shape = 'u8[1024]{0}', space=vmem, size = 0x400, scoped, tag = 'output window, operand 0']
    %7 = vsyncpa [#allocation3], 0
    %s8 = scalar_lea.sflag [#allocation3], 1
    %9 = vsyncpa %s8, 0
    %10 = vsyncpa [#allocation6], 0
    %s11 = scalar_lea.sflag [#allocation6], 1
    %12 = vsyncpa %s11, 0
    %13 = vsyncpa [#allocation4], 0
    %s14 = scalar_lea.sflag [#allocation4], 1
    %15 = vsyncpa %s14, 0
    loop: start=0, step=1, limit=4
    $region2: #{tpu_custom_call.1} parent=1 // loop_pre_header
      _
    $region3: #{tpu_custom_call.1} parent=1 // loop_header
      %s17 = sphi 0, %s21
      %p18 = scmp.ge.s32.totalorder %s17, 4
      %s24 = sphi 0, %s36
      %s25 = sphi 0, %s32
      %s26 = sphi 0, %s24
      %s27 = sphi 0, %s25
      %s28 = sphi 0, %s26
      %s29 = sphi 0, %s27
      %s41 = sphi 0, %s43
      %s44 = sphi 0, %s41
      %s45 = sphi 0, %s44
      %s61 = sphi 0, %s45
      %s69 = sphi 0, %s71
      %s72 = sphi 0, %s69
      %s73 = sphi 0, %s72
      %s89 = sphi 0, %s73
      %s97 = sphi 0, %s99
      %s100 = sphi 0, %s97
      %s101 = sphi 0, %s100
      %s117 = sphi 0, %s101
    $region4: #{tpu_custom_call.1} parent=1 // loop_header_branch
      %20 = sbr.rel (%p18) target = $region8
    $region5: #{tpu_custom_call.1} parent=1 // loop_body
      %s22 = ssub.s32 %s17, 1
      %s23 = ssub.s32 %s17, 2
      %s30 = sadd.s32 1, %s25
      %p31 = scmp.ge.s32.totalorder %s30, 2
      %s32 = scalar_select %p31, 0, %s30
      %s33 = sadd.s32 1, %s24
      %s34 = scalar_select %p31, %s33, %s24
      %p35 = scmp.ge.s32.totalorder %s34, 1
      %s36 = scalar_select %p35, 0, %s34
      %s37 = ssub.s32 %s24, %s36
      %s38 = ssub.s32 %s25, %s32
      %s39 = sor.u32 %s37, %s38
      %p40 = scmp.eq.s32.totalorder %s39, 0
      %s42 = sadd.s32 %s41, 1
      %s43 = scalar_select %p40, %s41, %s42
      %p46 = pneg %p40
      %p47 = scmp.eq.s32.totalorder %s17, 1
      %p48 = por %p46, %p47
      %p49 = scmp.ne.s32.totalorder %s41, %s44
      %p50 = scmp.eq.s32.totalorder %s17, 0
      %p51 = por %p49, %p50
      %p52 = scmp.ne.s32.totalorder %s41, %s44
      %p53 = scmp.eq.s32.totalorder %s22, 1
      %p54 = por %p52, %p53
      %p55 = scmp.ne.s32.totalorder %s44, %s45
      %p56 = scmp.eq.s32.totalorder %s22, 0
      %p57 = por %p55, %p56
      %p58 = scmp.ne.s32.totalorder %s44, %s45
      %p59 = scmp.eq.s32.totalorder %s23, 1
      %p60 = por %p58, %p59
      %p62 = scmp.ne.s32.totalorder %s45, %s61
      %p63 = scmp.eq.s32.totalorder %s23, 0
      %p64 = por %p62, %p63
      %s65 = ssub.s32 %s24, %s36
      %s66 = ssub.s32 %s25, %s32
      %s67 = sor.u32 %s65, %s66
      %p68 = scmp.eq.s32.totalorder %s67, 0
      %s70 = sadd.s32 %s69, 1
      %s71 = scalar_select %p68, %s69, %s70
      %p74 = pneg %p68
      %p75 = scmp.eq.s32.totalorder %s17, 1
      %p76 = por %p74, %p75
      %p77 = scmp.ne.s32.totalorder %s69, %s72
      %p78 = scmp.eq.s32.totalorder %s17, 0
      %p79 = por %p77, %p78
      %p80 = scmp.ne.s32.totalorder %s69, %s72
      %p81 = scmp.eq.s32.totalorder %s22, 1
      %p82 = por %p80, %p81
      %p83 = scmp.ne.s32.totalorder %s72, %s73
      %p84 = scmp.eq.s32.totalorder %s22, 0
      %p85 = por %p83, %p84
      %p86 = scmp.ne.s32.totalorder %s72, %s73
      %p87 = scmp.eq.s32.totalorder %s23, 1
      %p88 = por %p86, %p87
      %p90 = scmp.ne.s32.totalorder %s73, %s89
      %p91 = scmp.eq.s32.totalorder %s23, 0
      %p92 = por %p90, %p91
      %s93 = ssub.s32 %s24, %s36
      %s94 = ssub.s32 %s25, %s32
      %s95 = sor.u32 %s93, %s94
      %p96 = scmp.eq.s32.totalorder %s95, 0
      %s98 = sadd.s32 %s97, 1
      %s99 = scalar_select %p96, %s97, %s98
      %p102 = pneg %p96
      %p103 = scmp.eq.s32.totalorder %s17, 1
      %p104 = por %p102, %p103
      %p105 = scmp.ne.s32.totalorder %s97, %s100
      %p106 = scmp.eq.s32.totalorder %s17, 0
      %p107 = por %p105, %p106
      %p108 = scmp.ne.s32.totalorder %s97, %s100
      %p109 = scmp.eq.s32.totalorder %s22, 1
      %p110 = por %p108, %p109
      %p111 = scmp.ne.s32.totalorder %s100, %s101
      %p112 = scmp.eq.s32.totalorder %s22, 0
      %p113 = por %p111, %p112
      %p114 = scmp.ne.s32.totalorder %s100, %s101
      %p115 = scmp.eq.s32.totalorder %s23, 1
      %p116 = por %p114, %p115
      %p118 = scmp.ne.s32.totalorder %s101, %s117
      %p119 = scmp.eq.s32.totalorder %s23, 0
      %p120 = por %p118, %p119
      %p121 = scmp.le.s32.totalorder 1, %s17
      %p122 = scmp.lt.s32.totalorder %s17, 3
      %p123 = pnand %p121, %p122
      %p124 = pneg %p123
      // Predicated region
      $region9: #{tpu_custom_call.1} parent=5 // pred_check
        _
      $region10: #{tpu_custom_call.1} parent=5 // pred_check_branch
        %126 = sbr.rel (%p123) target = $region12
      $region11: #{tpu_custom_call.1} parent=5 // pred_region
        %s127 = ssub.s32 %s17, 1
      $region12: #{tpu_custom_call.1} parent=5 // pred_fallthru
        _
      %p128 = scmp.lt.s32.totalorder %s17, 2
      // Predicated region
      $region13: #{tpu_custom_call.1} parent=5 // pred_check
        %p129 = pneg %p128
      $region14: #{tpu_custom_call.1} parent=5 // pred_check_branch
        %131 = sbr.rel (%p129) target = $region16
      $region15: #{tpu_custom_call.1} parent=5 // pred_region
        // Predicated region
        $region17: #{tpu_custom_call.1} parent=15 // pred_check
          %p132 = pneg %p51
        $region18: #{tpu_custom_call.1} parent=15 // pred_check_branch
          %134 = sbr.rel (%p132) target = $region20
        $region19: #{tpu_custom_call.1} parent=15 // pred_region
          %s135 = sand.u32 %s41, 1
          %s136 = scalar_lea.sflag [#allocation3], %s135
          %s137 = sand.u32 %s41, 1
          %s138 = smul.addr %s137, 8
          %s139 = scalar_lea.vmem [#allocation2], %s138
          %s141 = ssub.s32 128, 128
          %142 = vsyncadd %s136, %s141
          %s143 = smul.addr %s24, 2
          %s144 = sadd.s32 %s25, %s143
          %s145 = smul.addr %s144, 128
          %s146 = scalar_lea.hbm %s0, %s145
          %s148 = sshll.u32 %s139, 4
          %s149 = int_to_ptr.vmem [resolvable:$true] %s148
          %151 = dma.hbm_to_vmem [thread:$0]  %s146, 128, %s149, %s136
        $region20: #{tpu_custom_call.1} parent=15 // pred_fallthru
          _
        // Predicated region
        $region21: #{tpu_custom_call.1} parent=15 // pred_check
          %p152 = pneg %p79
        $region22: #{tpu_custom_call.1} parent=15 // pred_check_branch
          %154 = sbr.rel (%p152) target = $region24
        $region23: #{tpu_custom_call.1} parent=15 // pred_region
          %s155 = sand.u32 %s69, 1
          %s156 = scalar_lea.sflag [#allocation6], %s155
          %s157 = sand.u32 %s69, 1
          %s158 = smul.addr %s157, 8
          %s159 = scalar_lea.vmem [#allocation5], %s158
          %s161 = ssub.s32 128, 128
          %162 = vsyncadd %s156, %s161
          %s163 = smul.addr %s24, 2
          %s164 = sadd.s32 %s25, %s163
          %s165 = smul.addr %s164, 128
          %s166 = scalar_lea.hbm %s1, %s165
          %s168 = sshll.u32 %s159, 4
          %s169 = int_to_ptr.vmem [resolvable:$true] %s168
          %171 = dma.hbm_to_vmem [thread:$0]  %s166, 128, %s169, %s156
        $region24: #{tpu_custom_call.1} parent=15 // pred_fallthru
          _
      $region16: #{tpu_custom_call.1} parent=5 // pred_fallthru
        _
      %p172 = scmp.le.s32.totalorder 1, %s17
      %p173 = scmp.lt.s32.totalorder %s17, 3
      %p174 = pnand %p172, %p173
      %p175 = pneg %p174
      // Predicated region
      $region25: #{tpu_custom_call.1} parent=5 // pred_check
        _
      $region26: #{tpu_custom_call.1} parent=5 // pred_check_branch
        %177 = sbr.rel (%p174) target = $region28
      $region27: #{tpu_custom_call.1} parent=5 // pred_region
        %s178 = ssub.s32 %s17, 1
        %s179 = sand.u32 %s44, 1
        %s180 = scalar_lea.sflag [#allocation3], %s179
        %s181 = sand.u32 %s44, 1
        %s182 = smul.addr %s181, 8
        %s183 = scalar_lea.vmem [#allocation2], %s182
        // Predicated region
        $region29: #{tpu_custom_call.1} parent=27 // pred_check
          %p184 = pneg %p57
        $region30: #{tpu_custom_call.1} parent=27 // pred_check_branch
          %186 = sbr.rel (%p184) target = $region32
        $region31: #{tpu_custom_call.1} parent=27 // pred_region
          %187 = dma.done %s180, 128
        $region32: #{tpu_custom_call.1} parent=27 // pred_fallthru
          _
        %s188 = sand.u32 %s72, 1
        %s189 = scalar_lea.sflag [#allocation6], %s188
        %s190 = sand.u32 %s72, 1
        %s191 = smul.addr %s190, 8
        %s192 = scalar_lea.vmem [#allocation5], %s191
        // Predicated region
        $region33: #{tpu_custom_call.1} parent=27 // pred_check
          %p193 = pneg %p85
        $region34: #{tpu_custom_call.1} parent=27 // pred_check_branch
          %195 = sbr.rel (%p193) target = $region36
        $region35: #{tpu_custom_call.1} parent=27 // pred_region
          %196 = dma.done %s189, 128
        $region36: #{tpu_custom_call.1} parent=27 // pred_fallthru
          _
        %s197 = sand.u32 %s44, 1
        %s198 = scalar_lea.sflag [#allocation3], %s197
        %s199 = sand.u32 %s44, 1
        %s200 = smul.addr %s199, 8
        %s201 = scalar_lea.vmem [#allocation2], %s200
        %p202 = pneg %p57
        %p203 = pneg %p54
        %s204 = sand.u32 %s72, 1
        %s205 = scalar_lea.sflag [#allocation6], %s204
        %s206 = sand.u32 %s72, 1
        %s207 = smul.addr %s206, 8
        %s208 = scalar_lea.vmem [#allocation5], %s207
        %p209 = pneg %p85
        %p210 = pneg %p82
        %p211 = pneg %p113
        %p212 = pneg %p110
        %s213 = sand.u32 %s100, 1
        %s214 = scalar_lea.sflag [#allocation4], %s213
        %s215 = sand.u32 %s100, 1
        %s216 = scalar_lea.vmem [#allocation7], %s215
        %v217 = vld [vmem:[%s183] sm:$0xff]
        %v218 = vld [vmem:[%s192] sm:$0xff]
        %v219 = vmul.f32 %v218, %v217
        %vm220 = vcmask 261120
        %v221 = vsel %vm220, %v219, 0.0
        %222 = vadd.xlane.f32.xlu0 %v221
        %v223 = vpop.xlane.xlu0 %222
        %v224 = vsel %vm220, %v218, 0.0
        %225 = vadd.xlane.f32.xlu0 %v224
        %v226 = vpop.xlane.xlu0 %225
        %v227 = vsel %vm220, %v217, -inf
        %228 = vmax.xlane.f32.xlu0 %v227
        %v229 = vpop.xlane.xlu0 %228
        %v230 = vsub.f32 %v217, %v229
        %v231 = vmul.f32 %v230, 1.442695
        %v232 = vpow.pop %v231
        %v233 = vsel %vm220, %v232, 0.0
        %234 = vadd.xlane.f32.xlu0 %v233
        %v235 = vpop.xlane.xlu0 %234
        %v236 = vlog2.pop %v235
        %v237 = vmul.f32 %v236, 0.6931472
        %v238 = vadd.f32 %v229, %v237
        %v239 = vmul.f32 %v238, %v226
        %v240 = vsub.f32 %v239, %v223
        %v241 = vlaneseq
        %v242 = vshrl.u32 %v241, 7
        %s243 = smul.u32 %s27, 8
        %v244 = vstv %s243
        %v245 = vadd.s32 %v244, %v242
        %vm246 = vcmp.lt.s32.totalorder %v245, 16
        %v247 = vsel %vm246, %v240, 0.0
        %v248 = vrot.slane %v247, 4
        %v249 = vadd.f32 %v247, %v248
        %v250 = vrot.slane %v249, 2
        %v251 = vadd.f32 %v249, %v250
        %v252 = vrot.slane %v251, 1
        %v253 = vadd.f32 %v251, %v252
        %254 = vst [vmem:[%s216] sm:$0x1] %v253
        %s255 = sand.u32 %s100, 1
        %s256 = scalar_lea.sflag [#allocation4], %s255
        %s257 = sand.u32 %s100, 1
        %s258 = scalar_lea.vmem [#allocation7], %s257
        // Predicated region
        $region37: #{tpu_custom_call.1} parent=27 // pred_check
          %p259 = pneg %p110
        $region38: #{tpu_custom_call.1} parent=27 // pred_check_branch
          %261 = sbr.rel (%p259) target = $region40
        $region39: #{tpu_custom_call.1} parent=27 // pred_region
          %s263 = ssub.s32 16, 16
          %264 = vsyncadd %s256, %s263
          %s265 = smul.addr %s26, 2
          %s266 = sadd.s32 %s27, %s265
          %s267 = smul.addr %s266, 16
          %s268 = scalar_lea.hbm %s2, %s267
          %s270 = sshll.u32 %s258, 4
          %s271 = int_to_ptr.vmem [resolvable:$true] %s270
          %273 = dma.vmem_to_hbm [thread:$0]  %s271, 16, %s268, %s256
        $region40: #{tpu_custom_call.1} parent=27 // pred_fallthru
          _
      $region28: #{tpu_custom_call.1} parent=5 // pred_fallthru
        _
      %p274 = scmp.le.s32.totalorder 2, %s17
      // Predicated region
      $region41: #{tpu_custom_call.1} parent=5 // pred_check
        %p275 = pneg %p274
      $region42: #{tpu_custom_call.1} parent=5 // pred_check_branch
        %277 = sbr.rel (%p275) target = $region44
      $region43: #{tpu_custom_call.1} parent=5 // pred_region
        %s278 = ssub.s32 %s17, 2
        // Predicated region
        $region45: #{tpu_custom_call.1} parent=43 // pred_check
          %p279 = pneg %p116
        $region46: #{tpu_custom_call.1} parent=43 // pred_check_branch
          %281 = sbr.rel (%p279) target = $region48
        $region47: #{tpu_custom_call.1} parent=43 // pred_region
          %s282 = sand.u32 %s101, 1
          %s283 = scalar_lea.sflag [#allocation4], %s282
          %s284 = sand.u32 %s101, 1
          %s285 = scalar_lea.vmem [#allocation7], %s284
          %286 = dma.done %s283, 16
        $region48: #{tpu_custom_call.1} parent=43 // pred_fallthru
          _
      $region44: #{tpu_custom_call.1} parent=5 // pred_fallthru
        _
    $region6: #{tpu_custom_call.1} parent=1 // loop_footer
      %s21 = sadd.s32 1, %s17
    $region7: #{tpu_custom_call.1} parent=1 // loop_footer_branch
      %16 = sbr.rel target = $region3
    $region8: #{tpu_custom_call.1} parent=1 // loop_exit
      _
    %287 = vsyncpa [#allocation3], 1
    %s288 = scalar_lea.sflag [#allocation3], 1
    %289 = vsyncpa %s288, 1
    %290 = vsyncpa [#allocation6], 1
    %s291 = scalar_lea.sflag [#allocation6], 1
    %292 = vsyncpa %s291, 1
    %293 = vsyncpa [#allocation4], 1
    %s294 = scalar_lea.sflag [#allocation4], 1
    %295 = vsyncpa %s294, 1

</llo_original>
